<compile_context>
chip_gen: v5e
topology: v5e:2x2
jax: 0.10.0
libtpu: 0.0.40
codegen_flags: <defaults>
</compile_context>

<pallas_src>
import functools

import jax
import jax.numpy as jnp
from jax.experimental import pallas as pl
from jax.experimental.pallas import tpu as pltpu


_MASK_NEG = -1.0e30   # finite "minus infinity": exp() underflows to 0, no NaNs
_EXP_CLAMP = 88.0     # exp(88) is still finite in f32


def _clip_loss_kernel(img_ref, txt_ref, out_ref,
                      row_max_ref, row_sum_ref, col_max_ref, col_sum_ref,
                      acc_ref, *, batch, tr, tc, pad, shared_exp, inv_batch):
    i = pl.program_id(0)            # row (image) tile
    j = pl.program_id(1)            # col (text) tile — reduction axis for rows
    nrt = pl.num_programs(0)
    nct = pl.num_programs(1)
    f32 = jnp.float32

    # ---- init scalar accumulators on the very first grid step ----
    @pl.when(jnp.logical_and(i == 0, j == 0))
    def _init_acc():
        acc_ref[0] = 0.0            # sum over rows of row-LSE
        acc_ref[1] = 0.0            # sum of diagonal logits (already scaled)

    # ---- init per-row-tile running stats at the start of each row sweep.
    #      Padded rows start at (max=0, sum=1) so their LSE is exactly 0. ----
    @pl.when(j == 0)
    def _init_row():
        if pad:
            rid = i * tr + jax.lax.broadcasted_iota(jnp.int32, (tr, 1), 0)
            valid = rid < batch
            row_max_ref[...] = jnp.where(valid, f32(_MASK_NEG), f32(0.0))
            row_sum_ref[...] = jnp.where(valid, f32(0.0), f32(1.0))
        else:
            row_max_ref[...] = jnp.full((tr, 1), _MASK_NEG, f32)
            row_sum_ref[...] = jnp.zeros((tr, 1), f32)

    # ---- init per-col-tile running stats the first time we touch them ----
    @pl.when(i == 0)
    def _init_col():
        if pad:
            cid = j * tc + jax.lax.broadcasted_iota(jnp.int32, (1, tc), 1)
            valid = cid < batch
            col_max_ref[j] = jnp.where(valid, f32(_MASK_NEG), f32(0.0))
            col_sum_ref[j] = jnp.where(valid, f32(0.0), f32(1.0))
        else:
            col_max_ref[j] = jnp.full((1, tc), _MASK_NEG, f32)
            col_sum_ref[j] = jnp.zeros((1, tc), f32)

    img = img_ref[...]              # (tr, D) bf16, pre-scaled by logit_scale
    txt = txt_ref[...]              # (tc, D) bf16

    # MXU: contract the embedding dim of both operands directly (no XLU
    # transpose), f32 accumulation.  logit_scale is already folded into `img`.
    logits = jax.lax.dot_general(
        img, txt,
        dimension_numbers=(((1,), (1,)), ((), ())),
        preferred_element_type=f32,
    )                               # (tr, tc) f32

    # ---- diagonal (label) terms: only on diagonal-band tiles, taken from the
    #      un-masked logits (padded feature rows are zero -> contribute 0),
    #      shared between the image-side and text-side losses ----
    on_band = jnp.logical_and(j * tc >= i * tr, j * tc < (i + 1) * tr)

    @pl.when(on_band)
    def _diag():
        off = j * tc - i * tr       # local row offset of this col tile's diag
        ri = jax.lax.broadcasted_iota(jnp.int32, (tr, tc), 0)
        ci = jax.lax.broadcasted_iota(jnp.int32, (tr, tc), 1)
        acc_ref[1] += jnp.sum(jnp.where(ri == ci + off, logits, f32(0.0)))

    # ---- mask padded rows / columns of the logits tile ----
    if pad:
        cid = j * tc + jax.lax.broadcasted_iota(jnp.int32, (1, tc), 1)
        rid = i * tr + jax.lax.broadcasted_iota(jnp.int32, (tr, 1), 0)
        logits = jnp.where(cid < batch, logits, f32(_MASK_NEG))
        logits = jnp.where(rid < batch, logits, f32(_MASK_NEG))

    # ---- two-sided (row + column) online softmax ----
    tile_row_max = jnp.max(logits, axis=-1, keepdims=True)     # (tr,1)  XLU
    tile_col_max = jnp.max(logits, axis=0, keepdims=True)      # (1,tc)  VPU

    m_prev = row_max_ref[...]
    m_new = jnp.maximum(m_prev, tile_row_max)
    cm_prev = col_max_ref[j]
    cm_new = jnp.maximum(cm_prev, tile_col_max)

    if shared_exp:
        # One full-tile exp against the scalar tile max; both running sums get
        # rescaled with cheap per-row / per-col vector exps.
        s = jnp.max(tile_col_max)                               # scalar tile max
        e = jnp.exp(logits - s)                                 # EUP, (tr,tc)
        row_e = jnp.sum(e, axis=-1, keepdims=True)              # (tr,1) XLU
        col_e = jnp.sum(e, axis=0, keepdims=True)               # (1,tc) VPU
        row_sum_ref[...] = (
            row_sum_ref[...] * jnp.exp(m_prev - m_new)
            + row_e * jnp.exp(jnp.minimum(s - m_new, _EXP_CLAMP)))
        col_sum_ref[j] = (
            col_sum_ref[j] * jnp.exp(cm_prev - cm_new)
            + col_e * jnp.exp(jnp.minimum(s - cm_new, _EXP_CLAMP)))
    else:
        # Safe two-exp path (no per-tile dynamic-range assumption).
        p = jnp.exp(logits - m_new)                             # (tr,tc)
        q = jnp.exp(logits - cm_new)                            # (tr,tc)
        row_sum_ref[...] = (row_sum_ref[...] * jnp.exp(m_prev - m_new)
                            + jnp.sum(p, axis=-1, keepdims=True))
        col_sum_ref[j] = (col_sum_ref[j] * jnp.exp(cm_prev - cm_new)
                          + jnp.sum(q, axis=0, keepdims=True))

    row_max_ref[...] = m_new
    col_max_ref[j] = cm_new

    # ---- fold this row tile's LSE into the scalar accumulator ----
    @pl.when(j == nct - 1)
    def _row_done():
        acc_ref[0] += jnp.sum(jnp.log(row_sum_ref[...]) + row_max_ref[...])

    # ---- global finalize on the last grid step ----
    @pl.when(jnp.logical_and(i == nrt - 1, j == nct - 1))
    def _finalize():
        col_lse = jnp.log(col_sum_ref[...]) + col_max_ref[...]  # (nct,1,tc)
        total = acc_ref[0] + jnp.sum(col_lse) - 2.0 * acc_ref[1]
        out_ref[0] = 0.5 * total * inv_batch


def _round_up(x, m):
    return ((x + m - 1) // m) * m


def _largest_divisor_leq(n, k):
    k = max(1, min(k, n))
    while n % k:
        k -= 1
    return k


def clip_loss(image_features, text_features, logit_scale, *,
              tile_rows=2048, tile_cols=256, shared_exp=True,
              vmem_limit_bytes=48 * 1024 * 1024):
    """ClipLoss.forward (world_size == 1). Returns a scalar f32 loss.

    shared_exp=True: one full-tile exp per grid step (exact while
    logit_scale * intra-tile cosine spread < ~88, true for CLIP's clamped
    scales except extreme values).  shared_exp=False: safe two-exp path.
    On v7x keep vmem_limit_bytes <= ~56 MiB; v6e can go to 64-96 MiB if you
    grow tile_rows beyond 2048.
    """
    B, D = image_features.shape
    assert text_features.shape == (B, D)

    # ---- tile selection: always stay on the tiled fast path (pad the batch,
    #      never fall back to 8-wide micro-tiles or an untiled BxB block). ----
    tc = max(8, min(_round_up(tile_cols, 8), _round_up(B, 8)))
    b_pad = _round_up(B, tc)
    nct = b_pad // tc
    r = _largest_divisor_leq(nct, max(1, tile_rows // tc))
    tr = r * tc                    # row tile is a multiple of the col tile
    nrt = nct // r
    pad = b_pad != B

    # bf16 MXU operands; fold logit_scale into the image-side cast so the
    # kernel never multiplies the full logits tile by the scale.
    scale = jnp.asarray(logit_scale, jnp.float32)
    img = (image_features.astype(jnp.float32) * scale).astype(jnp.bfloat16)
    txt = text_features.astype(jnp.bfloat16)
    if pad:
        extra = b_pad - B
        img = jnp.pad(img, ((0, extra), (0, 0)))
        txt = jnp.pad(txt, ((0, extra), (0, 0)))

    kernel = functools.partial(
        _clip_loss_kernel, batch=B, tr=tr, tc=tc, pad=pad,
        shared_exp=shared_exp, inv_batch=1.0 / B)

    grid_spec = pltpu.PrefetchScalarGridSpec(
        num_scalar_prefetch=0,
        grid=(nrt, nct),
        in_specs=[
            pl.BlockSpec((tr, D), lambda i, j: (i, 0)),   # image (row) panel
            pl.BlockSpec((tc, D), lambda i, j: (j, 0)),   # text (col) tile
        ],
        out_specs=pl.BlockSpec(memory_space=pltpu.MemorySpace.SMEM),
        scratch_shapes=[
            pltpu.VMEM((tr, 1), jnp.float32),             # row running max
            pltpu.VMEM((tr, 1), jnp.float32),             # row running sum-exp
            pltpu.VMEM((nct, 1, tc), jnp.float32),        # col running max
            pltpu.VMEM((nct, 1, tc), jnp.float32),        # col running sum-exp
            pltpu.SMEM((2,), jnp.float32),                # [sum_row_lse, sum_diag]
        ],
    )

    out = pl.pallas_call(
        kernel,
        grid_spec=grid_spec,
        out_shape=jax.ShapeDtypeStruct((1,), jnp.float32),
        compiler_params=pltpu.CompilerParams(
            dimension_semantics=("arbitrary", "arbitrary"),
            vmem_limit_bytes=vmem_limit_bytes,
        ),
    )(img, txt)
    return out[0]


def _reference_clip_loss(image_features, text_features, logit_scale):
    """Plain-JAX reference matching the PyTorch module (world_size=1)."""
    logits_per_image = logit_scale * image_features @ text_features.T
    logits_per_text = logit_scale * text_features @ image_features.T
    labels = jnp.arange(logits_per_image.shape[0])

    def ce(logits, labels):
        lse = jax.scipy.special.logsumexp(logits, axis=-1)
        tgt = jnp.take_along_axis(logits, labels[:, None], axis=-1)[:, 0]
        return jnp.mean(lse - tgt)

    return 0.5 * (ce(logits_per_image, labels) + ce(logits_per_text, labels))


def _make_features(key, B, D):
    k_img, k_txt = jax.random.split(key)
    img = jax.random.normal(k_img, (B, D), dtype=jnp.float32)
    txt = jax.random.normal(k_txt, (B, D), dtype=jnp.float32)
    img = img / jnp.linalg.norm(img, axis=-1, keepdims=True)
    txt = txt / jnp.linalg.norm(txt, axis=-1, keepdims=True)
    return img, txt


if __name__ == "__main__":
    logit_scale = jnp.float32(jnp.exp(jnp.float32(0.07)))  # deterministic scalar

    # Test 1: 2x2 tiled grid, no padding, shared-exp path.
    img, txt = _make_features(jax.random.PRNGKey(0), 32, 32)
    loss = jax.block_until_ready(
        clip_loss(img, txt, logit_scale, tile_rows=16, tile_cols=16))
    ref = _reference_clip_loss(img, txt, logit_scale)
    assert jnp.allclose(loss, ref, atol=2e-2, rtol=2e-2), (loss, ref)

    # Test 2: rectangular tiles (row tile = 2 col tiles), safe two-exp path.
    loss2 = jax.block_until_ready(
        clip_loss(img, txt, logit_scale, tile_rows=32, tile_cols=16,
                  shared_exp=False))
    assert jnp.allclose(loss2, ref, atol=2e-2, rtol=2e-2), (loss2, ref)

    # Test 3: awkward batch size -> padding + masking path.
    img3, txt3 = _make_features(jax.random.PRNGKey(1), 29, 32)
    loss3 = jax.block_until_ready(
        clip_loss(img3, txt3, logit_scale, tile_rows=16, tile_cols=16))
    ref3 = _reference_clip_loss(img3, txt3, logit_scale)
    assert jnp.allclose(loss3, ref3, atol=2e-2, rtol=2e-2), (loss3, ref3)

    print("KERNEL_OK")
</pallas_src>

<mosaic_0001>
module attributes {stable_mosaic.version = 11 : i64} {
  func.func @_clip_loss_kernel(%arg0: i32, %arg1: i32, %arg2: memref<16x32xbf16, #tpu.memory_space<vmem>>, %arg3: memref<16x32xbf16, #tpu.memory_space<vmem>>, %arg4: memref<1xf32, #tpu.memory_space<smem>>, %arg5: memref<16x1xf32, #tpu.memory_space<vmem>>, %arg6: memref<16x1xf32, #tpu.memory_space<vmem>>, %arg7: memref<2x1x16xf32, #tpu.memory_space<vmem>>, %arg8: memref<2x1x16xf32, #tpu.memory_space<vmem>>, %arg9: memref<2xf32, #tpu.memory_space<smem>>) attributes {dimension_semantics = [#tpu.dimension_semantics<arbitrary>, #tpu.dimension_semantics<arbitrary>], iteration_bounds = array<i64: 2, 2>, scalar_prefetch = 0 : i64, scratch_operands = 5 : i64, tpu.core_type = #tpu.core_type<tc>, window_params = [{transform_indices = @transform_0, window_bounds = array<i64: 16, 32>}, {transform_indices = @transform_1, window_bounds = array<i64: 16, 32>}, {transform_indices = @transform_2, window_bounds = array<i64: 1>}]} {
    %c0_i32 = arith.constant 0 : i32
    %0 = arith.cmpi eq, %arg0, %c0_i32 : i32
    %c0_i32_0 = arith.constant 0 : i32
    %1 = arith.cmpi eq, %arg1, %c0_i32_0 : i32
    %2 = arith.andi %0, %1 : i1
    %3 = arith.extui %2 : i1 to i32
    %c0_i32_1 = arith.constant 0 : i32
    %4 = arith.cmpi ne, %3, %c0_i32_1 : i32
    scf.if %4 {
      %cst_41 = arith.constant 0.000000e+00 : f32
      %c0_42 = arith.constant 0 : index
      %87 = memref.load %arg9[%c0_42] : memref<2xf32, #tpu.memory_space<smem>>
      memref.store %cst_41, %arg9[%c0_42] : memref<2xf32, #tpu.memory_space<smem>>
      %cst_43 = arith.constant 0.000000e+00 : f32
      %c1 = arith.constant 1 : index
      %88 = memref.load %arg9[%c1] : memref<2xf32, #tpu.memory_space<smem>>
      memref.store %cst_43, %arg9[%c1] : memref<2xf32, #tpu.memory_space<smem>>
    } else {
    }
    %c0_i32_2 = arith.constant 0 : i32
    %5 = arith.cmpi eq, %arg1, %c0_i32_2 : i32
    %6 = arith.extui %5 : i1 to i32
    %c0_i32_3 = arith.constant 0 : i32
    %7 = arith.cmpi ne, %6, %c0_i32_3 : i32
    scf.if %7 {
      %cst_41 = arith.constant -1.000000e+30 : f32
      %87 = vector.broadcast %cst_41 : f32 to vector<16x1xf32>
      %c0_42 = arith.constant 0 : index
      %c0_43 = arith.constant 0 : index
      %88 = vector.load %arg5[%c0_42, %c0_43] : memref<16x1xf32, #tpu.memory_space<vmem>>, vector<16x1xf32>
      tpu.vector_store %arg5[%c0_42, %c0_43], %87 {strides = array<i32>} : memref<16x1xf32, #tpu.memory_space<vmem>>, vector<16x1xf32>,
      %cst_44 = arith.constant 0.000000e+00 : f32
      %89 = vector.broadcast %cst_44 : f32 to vector<16x1xf32>
      %c0_45 = arith.constant 0 : index
      %c0_46 = arith.constant 0 : index
      %90 = vector.load %arg6[%c0_45, %c0_46] : memref<16x1xf32, #tpu.memory_space<vmem>>, vector<16x1xf32>
      tpu.vector_store %arg6[%c0_45, %c0_46], %89 {strides = array<i32>} : memref<16x1xf32, #tpu.memory_space<vmem>>, vector<16x1xf32>,
    } else {
    }
    %c0_i32_4 = arith.constant 0 : i32
    %8 = arith.cmpi eq, %arg0, %c0_i32_4 : i32
    %9 = arith.extui %8 : i1 to i32
    %c0_i32_5 = arith.constant 0 : i32
    %10 = arith.cmpi ne, %9, %c0_i32_5 : i32
    scf.if %10 {
      %cst_41 = arith.constant -1.000000e+30 : f32
      %87 = vector.broadcast %cst_41 : f32 to vector<1x16xf32>
      %88 = arith.index_cast %arg1 : i32 to index
      %c0_42 = arith.constant 0 : index
      %c0_43 = arith.constant 0 : index
      %89 = vector.load %arg7[%88, %c0_42, %c0_43] : memref<2x1x16xf32, #tpu.memory_space<vmem>>, vector<1x1x16xf32>
      %90 = vector.shape_cast %89 : vector<1x1x16xf32> to vector<1x16xf32>
      %91 = vector.shape_cast %87 : vector<1x16xf32> to vector<1x1x16xf32>
      tpu.vector_store %arg7[%88, %c0_42, %c0_43], %91 {strides = array<i32>} : memref<2x1x16xf32, #tpu.memory_space<vmem>>, vector<1x1x16xf32>,
      %cst_44 = arith.constant 0.000000e+00 : f32
      %92 = vector.broadcast %cst_44 : f32 to vector<1x16xf32>
      %93 = arith.index_cast %arg1 : i32 to index
      %c0_45 = arith.constant 0 : index
      %c0_46 = arith.constant 0 : index
      %94 = vector.load %arg8[%93, %c0_45, %c0_46] : memref<2x1x16xf32, #tpu.memory_space<vmem>>, vector<1x1x16xf32>
      %95 = vector.shape_cast %94 : vector<1x1x16xf32> to vector<1x16xf32>
      %96 = vector.shape_cast %92 : vector<1x16xf32> to vector<1x1x16xf32>
      tpu.vector_store %arg8[%93, %c0_45, %c0_46], %96 {strides = array<i32>} : memref<2x1x16xf32, #tpu.memory_space<vmem>>, vector<1x1x16xf32>,
    } else {
    }
    %c0 = arith.constant 0 : index
    %c0_6 = arith.constant 0 : index
    %11 = vector.load %arg2[%c0, %c0_6] : memref<16x32xbf16, #tpu.memory_space<vmem>>, vector<16x32xbf16>
    %c0_7 = arith.constant 0 : index
    %c0_8 = arith.constant 0 : index
    %12 = vector.load %arg3[%c0_7, %c0_8] : memref<16x32xbf16, #tpu.memory_space<vmem>>, vector<16x32xbf16>
    %cst = arith.constant dense<0.000000e+00> : vector<16x16xf32>
    %13 = tpu.matmul %11, %12, %cst {dimension_numbers = #tpu.dot_dimension_numbers<[1], [1], [0], [0], [0, 0, 1, 0], [], []>} : vector<16x32xbf16>, vector<16x32xbf16>, vector<16x16xf32> -> vector<16x16xf32>
    %c16_i32 = arith.constant 16 : i32
    %14 = arith.muli %arg1, %c16_i32 : i32
    %c16_i32_9 = arith.constant 16 : i32
    %15 = arith.muli %arg0, %c16_i32_9 : i32
    %16 = arith.cmpi sge, %14, %15 : i32
    %c16_i32_10 = arith.constant 16 : i32
    %17 = arith.muli %arg1, %c16_i32_10 : i32
    %c1_i32 = arith.constant 1 : i32
    %18 = arith.addi %arg0, %c1_i32 : i32
    %c16_i32_11 = arith.constant 16 : i32
    %19 = arith.muli %18, %c16_i32_11 : i32
    %20 = arith.cmpi slt, %17, %19 : i32
    %21 = arith.andi %16, %20 : i1
    %22 = arith.extui %21 : i1 to i32
    %c0_i32_12 = arith.constant 0 : i32
    %23 = arith.cmpi ne, %22, %c0_i32_12 : i32
    scf.if %23 {
      %c16_i32_41 = arith.constant 16 : i32
      %87 = arith.muli %arg1, %c16_i32_41 : i32
      %c16_i32_42 = arith.constant 16 : i32
      %88 = arith.muli %arg0, %c16_i32_42 : i32
      %89 = arith.subi %87, %88 : i32
      %90 = tpu.iota {dimensions = array<i32: 0>} : vector<16x16xi32>
      %91 = tpu.iota {dimensions = array<i32: 1>} : vector<16x16xi32>
      %c1 = arith.constant 1 : index
      %92 = memref.load %arg9[%c1] : memref<2xf32, #tpu.memory_space<smem>>
      %93 = vector.broadcast %89 : i32 to vector<16x16xi32>
      %94 = arith.addi %91, %93 : vector<16x16xi32>
      %95 = arith.cmpi eq, %90, %94 : vector<16x16xi32>
      %cst_43 = arith.constant 0.000000e+00 : f32
      %96 = vector.broadcast %cst_43 : f32 to vector<16x16xf32>
      %97 = arith.select %95, %13, %96 : vector<16x16xi1>, vector<16x16xf32>
      %98 = vector.shape_cast %97 : vector<16x16xf32> to vector<1x16x16xf32>
      %cst_44 = arith.constant dense<0.000000e+00> : vector<1xf32>
      %99 = vector.multi_reduction <add>, %98, %cst_44 [1, 2] : vector<1x16x16xf32> to vector<1xf32>
      %100 = vector.shape_cast %99 : vector<1xf32> to vector<1x1x1xf32>
      %101 = vector.extract %100[0, 0, 0] : f32 from vector<1x1x1xf32>
      %102 = arith.addf %92, %101 : f32
      %c1_45 = arith.constant 1 : index
      %103 = memref.load %arg9[%c1_45] : memref<2xf32, #tpu.memory_space<smem>>
      memref.store %102, %arg9[%c1_45] : memref<2xf32, #tpu.memory_space<smem>>
    } else {
    }
    %cst_13 = arith.constant dense<0xFF800000> : vector<16xf32>
    %24 = vector.multi_reduction <maximumf>, %13, %cst_13 [1] : vector<16x16xf32> to vector<16xf32>
    %25 = vector.shape_cast %24 : vector<16xf32> to vector<16x1xf32>
    %cst_14 = arith.constant dense<0xFF800000> : vector<16xf32>
    %26 = vector.multi_reduction <maximumf>, %13, %cst_14 [0] : vector<16x16xf32> to vector<16xf32>
    %27 = vector.shape_cast %26 : vector<16xf32> to vector<1x16xf32>
    %c0_15 = arith.constant 0 : index
    %c0_16 = arith.constant 0 : index
    %28 = vector.load %arg5[%c0_15, %c0_16] : memref<16x1xf32, #tpu.memory_space<vmem>>, vector<16x1xf32>
    %29 = arith.maximumf %28, %25 : vector<16x1xf32>
    %30 = arith.index_cast %arg1 : i32 to index
    %c0_17 = arith.constant 0 : index
    %c0_18 = arith.constant 0 : index
    %31 = vector.load %arg7[%30, %c0_17, %c0_18] : memref<2x1x16xf32, #tpu.memory_space<vmem>>, vector<1x1x16xf32>
    %32 = vector.shape_cast %31 : vector<1x1x16xf32> to vector<1x16xf32>
    %33 = arith.maximumf %32, %27 : vector<1x16xf32>
    %34 = vector.shape_cast %27 : vector<1x16xf32> to vector<1x1x16xf32>
    %cst_19 = arith.constant dense<0xFF800000> : vector<1xf32>
    %35 = vector.multi_reduction <maximumf>, %34, %cst_19 [1, 2] : vector<1x1x16xf32> to vector<1xf32>
    %36 = vector.shape_cast %35 : vector<1xf32> to vector<1x1x1xf32>
    %37 = vector.extract %36[0, 0, 0] : f32 from vector<1x1x1xf32>
    %38 = vector.broadcast %37 : f32 to vector<16x16xf32>
    %39 = arith.subf %13, %38 : vector<16x16xf32>
    %40 = math.exp %39 : vector<16x16xf32>
    %cst_20 = arith.constant dense<0.000000e+00> : vector<16xf32>
    %41 = vector.multi_reduction <add>, %40, %cst_20 [1] : vector<16x16xf32> to vector<16xf32>
    %42 = vector.shape_cast %41 : vector<16xf32> to vector<16x1xf32>
    %cst_21 = arith.constant dense<0.000000e+00> : vector<16xf32>
    %43 = vector.multi_reduction <add>, %40, %cst_21 [0] : vector<16x16xf32> to vector<16xf32>
    %44 = vector.shape_cast %43 : vector<16xf32> to vector<1x16xf32>
    %c0_22 = arith.constant 0 : index
    %c0_23 = arith.constant 0 : index
    %45 = vector.load %arg6[%c0_22, %c0_23] : memref<16x1xf32, #tpu.memory_space<vmem>>, vector<16x1xf32>
    %46 = arith.subf %28, %29 : vector<16x1xf32>
    %47 = math.exp %46 : vector<16x1xf32>
    %48 = arith.mulf %45, %47 : vector<16x1xf32>
    %49 = vector.broadcast %37 : f32 to vector<16x1xf32>
    %50 = arith.subf %49, %29 : vector<16x1xf32>
    %cst_24 = arith.constant 8.800000e+01 : f32
    %51 = vector.broadcast %cst_24 : f32 to vector<16x1xf32>
    %52 = arith.minimumf %50, %51 : vector<16x1xf32>
    %53 = math.exp %52 : vector<16x1xf32>
    %54 = arith.mulf %42, %53 : vector<16x1xf32>
    %55 = arith.addf %48, %54 : vector<16x1xf32>
    %c0_25 = arith.constant 0 : index
    %c0_26 = arith.constant 0 : index
    %56 = vector.load %arg6[%c0_25, %c0_26] : memref<16x1xf32, #tpu.memory_space<vmem>>, vector<16x1xf32>
    tpu.vector_store %arg6[%c0_25, %c0_26], %55 {strides = array<i32>} : memref<16x1xf32, #tpu.memory_space<vmem>>, vector<16x1xf32>,
    %57 = arith.index_cast %arg1 : i32 to index
    %c0_27 = arith.constant 0 : index
    %c0_28 = arith.constant 0 : index
    %58 = vector.load %arg8[%57, %c0_27, %c0_28] : memref<2x1x16xf32, #tpu.memory_space<vmem>>, vector<1x1x16xf32>
    %59 = vector.shape_cast %58 : vector<1x1x16xf32> to vector<1x16xf32>
    %60 = arith.subf %32, %33 : vector<1x16xf32>
    %61 = math.exp %60 : vector<1x16xf32>
    %62 = arith.mulf %59, %61 : vector<1x16xf32>
    %63 = vector.broadcast %37 : f32 to vector<1x16xf32>
    %64 = arith.subf %63, %33 : vector<1x16xf32>
    %cst_29 = arith.constant 8.800000e+01 : f32
    %65 = vector.broadcast %cst_29 : f32 to vector<1x16xf32>
    %66 = arith.minimumf %64, %65 : vector<1x16xf32>
    %67 = math.exp %66 : vector<1x16xf32>
    %68 = arith.mulf %44, %67 : vector<1x16xf32>
    %69 = arith.addf %62, %68 : vector<1x16xf32>
    %70 = arith.index_cast %arg1 : i32 to index
    %c0_30 = arith.constant 0 : index
    %c0_31 = arith.constant 0 : index
    %71 = vector.load %arg8[%70, %c0_30, %c0_31] : memref<2x1x16xf32, #tpu.memory_space<vmem>>, vector<1x1x16xf32>
    %72 = vector.shape_cast %71 : vector<1x1x16xf32> to vector<1x16xf32>
    %73 = vector.shape_cast %69 : vector<1x16xf32> to vector<1x1x16xf32>
    tpu.vector_store %arg8[%70, %c0_30, %c0_31], %73 {strides = array<i32>} : memref<2x1x16xf32, #tpu.memory_space<vmem>>, vector<1x1x16xf32>,
    %c0_32 = arith.constant 0 : index
    %c0_33 = arith.constant 0 : index
    %74 = vector.load %arg5[%c0_32, %c0_33] : memref<16x1xf32, #tpu.memory_space<vmem>>, vector<16x1xf32>
    tpu.vector_store %arg5[%c0_32, %c0_33], %29 {strides = array<i32>} : memref<16x1xf32, #tpu.memory_space<vmem>>, vector<16x1xf32>,
    %75 = arith.index_cast %arg1 : i32 to index
    %c0_34 = arith.constant 0 : index
    %c0_35 = arith.constant 0 : index
    %76 = vector.load %arg7[%75, %c0_34, %c0_35] : memref<2x1x16xf32, #tpu.memory_space<vmem>>, vector<1x1x16xf32>
    %77 = vector.shape_cast %76 : vector<1x1x16xf32> to vector<1x16xf32>
    %78 = vector.shape_cast %33 : vector<1x16xf32> to vector<1x1x16xf32>
    tpu.vector_store %arg7[%75, %c0_34, %c0_35], %78 {strides = array<i32>} : memref<2x1x16xf32, #tpu.memory_space<vmem>>, vector<1x1x16xf32>,
    %c1_i32_36 = arith.constant 1 : i32
    %79 = arith.cmpi eq, %arg1, %c1_i32_36 : i32
    %80 = arith.extui %79 : i1 to i32
    %c0_i32_37 = arith.constant 0 : i32
    %81 = arith.cmpi ne, %80, %c0_i32_37 : i32
    scf.if %81 {
      %c0_41 = arith.constant 0 : index
      %87 = memref.load %arg9[%c0_41] : memref<2xf32, #tpu.memory_space<smem>>
      %c0_42 = arith.constant 0 : index
      %c0_43 = arith.constant 0 : index
      %88 = vector.load %arg6[%c0_42, %c0_43] : memref<16x1xf32, #tpu.memory_space<vmem>>, vector<16x1xf32>
      %89 = math.log %88 : vector<16x1xf32>
      %c0_44 = arith.constant 0 : index
      %c0_45 = arith.constant 0 : index
      %90 = vector.load %arg5[%c0_44, %c0_45] : memref<16x1xf32, #tpu.memory_space<vmem>>, vector<16x1xf32>
      %91 = arith.addf %89, %90 : vector<16x1xf32>
      %92 = vector.shape_cast %91 : vector<16x1xf32> to vector<1x16x1xf32>
      %cst_46 = arith.constant dense<0.000000e+00> : vector<1xf32>
      %93 = vector.multi_reduction <add>, %92, %cst_46 [1, 2] : vector<1x16x1xf32> to vector<1xf32>
      %94 = vector.shape_cast %93 : vector<1xf32> to vector<1x1x1xf32>
      %95 = vector.extract %94[0, 0, 0] : f32 from vector<1x1x1xf32>
      %96 = arith.addf %87, %95 : f32
      %c0_47 = arith.constant 0 : index
      %97 = memref.load %arg9[%c0_47] : memref<2xf32, #tpu.memory_space<smem>>
      memref.store %96, %arg9[%c0_47] : memref<2xf32, #tpu.memory_space<smem>>
    } else {
    }
    %c1_i32_38 = arith.constant 1 : i32
    %82 = arith.cmpi eq, %arg0, %c1_i32_38 : i32
    %c1_i32_39 = arith.constant 1 : i32
    %83 = arith.cmpi eq, %arg1, %c1_i32_39 : i32
    %84 = arith.andi %82, %83 : i1
    %85 = arith.extui %84 : i1 to i32
    %c0_i32_40 = arith.constant 0 : i32
    %86 = arith.cmpi ne, %85, %c0_i32_40 : i32
    scf.if %86 {
      %c0_41 = arith.constant 0 : index
      %c0_42 = arith.constant 0 : index
      %c0_43 = arith.constant 0 : index
      %87 = vector.load %arg8[%c0_41, %c0_42, %c0_43] : memref<2x1x16xf32, #tpu.memory_space<vmem>>, vector<2x1x16xf32>
      %88 = math.log %87 : vector<2x1x16xf32>
      %c0_44 = arith.constant 0 : index
      %c0_45 = arith.constant 0 : index
      %c0_46 = arith.constant 0 : index
      %89 = vector.load %arg7[%c0_44, %c0_45, %c0_46] : memref<2x1x16xf32, #tpu.memory_space<vmem>>, vector<2x1x16xf32>
      %90 = arith.addf %88, %89 : vector<2x1x16xf32>
      %c0_47 = arith.constant 0 : index
      %91 = memref.load %arg9[%c0_47] : memref<2xf32, #tpu.memory_space<smem>>
      %92 = vector.shape_cast %90 : vector<2x1x16xf32> to vector<1x2x1x16xf32>
      %cst_48 = arith.constant dense<0.000000e+00> : vector<1xf32>
      %93 = vector.multi_reduction <add>, %92, %cst_48 [1, 2, 3] : vector<1x2x1x16xf32> to vector<1xf32>
      %94 = vector.shape_cast %93 : vector<1xf32> to vector<1x1x1x1xf32>
      %95 = vector.extract %94[0, 0, 0, 0] : f32 from vector<1x1x1x1xf32>
      %96 = arith.addf %91, %95 : f32
      %c1 = arith.constant 1 : index
      %97 = memref.load %arg9[%c1] : memref<2xf32, #tpu.memory_space<smem>>
      %cst_49 = arith.constant 2.000000e+00 : f32
      %98 = arith.mulf %cst_49, %97 : f32
      %99 = arith.subf %96, %98 : f32
      %cst_50 = arith.constant 5.000000e-01 : f32
      %100 = arith.mulf %cst_50, %99 : f32
      %cst_51 = arith.constant 3.125000e-02 : f32
      %101 = arith.mulf %100, %cst_51 : f32
      %c0_52 = arith.constant 0 : index
      %102 = memref.load %arg4[%c0_52] : memref<1xf32, #tpu.memory_space<smem>>
      memref.store %101, %arg4[%c0_52] : memref<1xf32, #tpu.memory_space<smem>>
    } else {
    }
    return
  }
  func.func @transform_0(%arg0: i32, %arg1: i32) -> (i32, i32) {
    %c0_i32 = arith.constant 0 : i32
    %c0_i32_0 = arith.constant 0 : i32
    return %arg0, %c0_i32 : i32, i32
  }
  func.func @transform_1(%arg0: i32, %arg1: i32) -> (i32, i32) {
    %c0_i32 = arith.constant 0 : i32
    %c0_i32_0 = arith.constant 0 : i32
    return %arg1, %c0_i32 : i32, i32
  }
  func.func @transform_2(%arg0: i32, %arg1: i32) -> i32 {
    %c0_i32 = arith.constant 0 : i32
    %c0_i32_0 = arith.constant 0 : i32
    return %c0_i32 : i32
  }
}

</mosaic_0001>

<llo_original>
// kernel: tpu_custom_call.1
$region0: #{tpu_custom_call.1}
  #allocation0 [shape = 'u32[]', space=smem, size = 0x4, offset = 0x4, fixed_abs, tag = 'smem constant byte address 0x4 - core index']
  #allocation1 [shape = 'u32[72,128]{1,0:T(1,128)}', space=vmem, size = 0x9000, scoped, tag = 'internal scratch']
  #allocation2 [shape = 'f32[16,1]{1,0:T(8,128)}', space=vmem, size = 0x2000, scoped, tag = 'scratch operand']
  #allocation3 [shape = 'f32[16,1]{1,0:T(8,128)}', space=vmem, size = 0x2000, scoped, tag = 'scratch operand']
  #allocation4 [shape = 'f32[2,1,16]{2,1,0:T(1,128)}', space=vmem, size = 0x400, scoped, tag = 'scratch operand']
  #allocation5 [shape = 'f32[2,1,16]{2,1,0:T(1,128)}', space=vmem, size = 0x400, scoped, tag = 'scratch operand']
  #allocation6 [shape = 'f32[2]{0:T(128)}', space=smem, size = 0x200, scoped, tag = 'scratch operand']
  %s0 = inlined_call_operand.hbm [shape: bf16[32,32], index: 0, kind: input, shape index: {}]
  %s1 = inlined_call_operand.hbm [shape: bf16[32,32], index: 1, kind: input, shape index: {}]
  %s2 = inlined_call_operand.hbm [shape: f32[1], index: 2, kind: output, shape index: {}]
  %s3 = sld [smem:[#allocation0]]
  $region73: #{tpu_custom_call.1} parent=0
    _
  %s5 = ssub.s32 1, %s3
  %s6 = scalar_select 0, %s5, %s3
  $region1: #{tpu_custom_call.1} parent=0
    #allocation7 [shape = 'u8[8192]{0}', space=vmem, size = 0x2000, scoped, tag = 'input window, operand 0']
    #allocation8 [shape = 's32[2]{0}', space=sflag, size = 0x8, scoped, tag = 'scoped memory for tpu_custom_call.1']
    #allocation9 [shape = 's32[2]{0}', space=sflag, size = 0x8, scoped, tag = 'scoped memory for tpu_custom_call.1']
    #allocation10 [shape = 'u8[8192]{0}', space=vmem, size = 0x2000, scoped, tag = 'input window, operand 1']
    #allocation11 [shape = 's32[2]{0}', space=sflag, size = 0x8, scoped, tag = 'scoped memory for tpu_custom_call.1']
    #allocation12 [shape = 'u8[512]{0}', space=smem, size = 0x200, scoped, tag = 'output window, operand 0, single buffered']
    %7 = vsyncpa [#allocation8], 0
    %s8 = scalar_lea.sflag [#allocation8], 1
    %9 = vsyncpa %s8, 0
    %10 = vsyncpa [#allocation11], 0
    %s11 = scalar_lea.sflag [#allocation11], 1
    %12 = vsyncpa %s11, 0
    %13 = vsyncpa [#allocation9], 0
    loop: start=0, step=1, limit=6
    $region2: #{tpu_custom_call.1} parent=1 // loop_pre_header
      _
    $region3: #{tpu_custom_call.1} parent=1 // loop_header
      %s15 = sphi 0, %s19
      %p16 = scmp.ge.s32.totalorder %s15, 6
      %s22 = sphi 0, %s34
      %s23 = sphi 0, %s30
      %s24 = sphi 0, %s22
      %s25 = sphi 0, %s23
      %s26 = sphi 0, %s24
      %s27 = sphi 0, %s25
      %s37 = sphi 0, %s39
      %s40 = sphi 0, %s37
      %s41 = sphi 0, %s40
      %s57 = sphi 0, %s41
      %s63 = sphi 0, %s65
      %s66 = sphi 0, %s63
      %s67 = sphi 0, %s66
      %s83 = sphi 0, %s67
      %s87 = sphi 0, %s87
      %s89 = sphi 0, %s87
      %s90 = sphi 0, %s89
      %s104 = sphi 0, %s90
    $region4: #{tpu_custom_call.1} parent=1 // loop_header_branch
      %18 = sbr.rel (%p16) target = $region8
    $region5: #{tpu_custom_call.1} parent=1 // loop_body
      %s20 = ssub.s32 %s15, 1
      %s21 = ssub.s32 %s15, 2
      %s28 = sadd.s32 1, %s23
      %p29 = scmp.ge.s32.totalorder %s28, 2
      %s30 = scalar_select %p29, 0, %s28
      %s31 = sadd.s32 1, %s22
      %s32 = scalar_select %p29, %s31, %s22
      %p33 = scmp.ge.s32.totalorder %s32, 2
      %s34 = scalar_select %p33, 0, %s32
      %s35 = ssub.s32 %s22, %s34
      %p36 = scmp.eq.s32.totalorder %s35, 0
      %s38 = sadd.s32 %s37, 1
      %s39 = scalar_select %p36, %s37, %s38
      %p42 = pneg %p36
      %p43 = scmp.eq.s32.totalorder %s15, 3
      %p44 = por %p42, %p43
      %p45 = scmp.ne.s32.totalorder %s37, %s40
      %p46 = scmp.eq.s32.totalorder %s15, 0
      %p47 = por %p45, %p46
      %p48 = scmp.ne.s32.totalorder %s37, %s40
      %p49 = scmp.eq.s32.totalorder %s20, 3
      %p50 = por %p48, %p49
      %p51 = scmp.ne.s32.totalorder %s40, %s41
      %p52 = scmp.eq.s32.totalorder %s20, 0
      %p53 = por %p51, %p52
      %p54 = scmp.ne.s32.totalorder %s40, %s41
      %p55 = scmp.eq.s32.totalorder %s21, 3
      %p56 = por %p54, %p55
      %p58 = scmp.ne.s32.totalorder %s41, %s57
      %p59 = scmp.eq.s32.totalorder %s21, 0
      %p60 = por %p58, %p59
      %s61 = ssub.s32 %s23, %s30
      %p62 = scmp.eq.s32.totalorder %s61, 0
      %s64 = sadd.s32 %s63, 1
      %s65 = scalar_select %p62, %s63, %s64
      %p68 = pneg %p62
      %p69 = scmp.eq.s32.totalorder %s15, 3
      %p70 = por %p68, %p69
      %p71 = scmp.ne.s32.totalorder %s63, %s66
      %p72 = scmp.eq.s32.totalorder %s15, 0
      %p73 = por %p71, %p72
      %p74 = scmp.ne.s32.totalorder %s63, %s66
      %p75 = scmp.eq.s32.totalorder %s20, 3
      %p76 = por %p74, %p75
      %p77 = scmp.ne.s32.totalorder %s66, %s67
      %p78 = scmp.eq.s32.totalorder %s20, 0
      %p79 = por %p77, %p78
      %p80 = scmp.ne.s32.totalorder %s66, %s67
      %p81 = scmp.eq.s32.totalorder %s21, 3
      %p82 = por %p80, %p81
      %p84 = scmp.ne.s32.totalorder %s67, %s83
      %p85 = scmp.eq.s32.totalorder %s21, 0
      %p86 = por %p84, %p85
      %s88 = sadd.s32 %s87, 1
      %p91 = scmp.eq.s32.totalorder %s15, 3
      %p92 = scmp.ne.s32.totalorder %s87, %s89
      %p93 = scmp.eq.s32.totalorder %s15, 0
      %p94 = por %p92, %p93
      %p95 = scmp.ne.s32.totalorder %s87, %s89
      %p96 = scmp.eq.s32.totalorder %s20, 3
      %p97 = por %p95, %p96
      %p98 = scmp.ne.s32.totalorder %s89, %s90
      %p99 = scmp.eq.s32.totalorder %s20, 0
      %p100 = por %p98, %p99
      %p101 = scmp.ne.s32.totalorder %s89, %s90
      %p102 = scmp.eq.s32.totalorder %s21, 3
      %p103 = por %p101, %p102
      %p105 = scmp.ne.s32.totalorder %s90, %s104
      %p106 = scmp.eq.s32.totalorder %s21, 0
      %p107 = por %p105, %p106
      %p108 = scmp.le.s32.totalorder 1, %s15
      %p109 = scmp.lt.s32.totalorder %s15, 5
      %p110 = pnand %p108, %p109
      %p111 = pneg %p110
      // Predicated region
      $region9: #{tpu_custom_call.1} parent=5 // pred_check
        _
      $region10: #{tpu_custom_call.1} parent=5 // pred_check_branch
        %113 = sbr.rel (%p110) target = $region12
      $region11: #{tpu_custom_call.1} parent=5 // pred_region
        %s114 = ssub.s32 %s15, 1
      $region12: #{tpu_custom_call.1} parent=5 // pred_fallthru
        _
      %p115 = scmp.lt.s32.totalorder %s15, 4
      // Predicated region
      $region13: #{tpu_custom_call.1} parent=5 // pred_check
        %p116 = pneg %p115
      $region14: #{tpu_custom_call.1} parent=5 // pred_check_branch
        %118 = sbr.rel (%p116) target = $region16
      $region15: #{tpu_custom_call.1} parent=5 // pred_region
        // Predicated region
        $region17: #{tpu_custom_call.1} parent=15 // pred_check
          %p119 = pneg %p47
        $region18: #{tpu_custom_call.1} parent=15 // pred_check_branch
          %121 = sbr.rel (%p119) target = $region20
        $region19: #{tpu_custom_call.1} parent=15 // pred_region
          %s122 = sand.u32 %s37, 1
          %s123 = scalar_lea.sflag [#allocation8], %s122
          %s124 = sand.u32 %s37, 1
          %s125 = smul.addr %s124, 8
          %s126 = scalar_lea.vmem [#allocation7], %s125
          %s127 = smul.u32 2, %s22
          %129 = vsyncadd %s123, 0
          %s130 = smul.addr %s127, 4
          %s131 = scalar_lea.hbm %s0, %s130
          %s132 = sshll.u32 %s131, 4
          %s133 = int_to_ptr.hbm [resolvable:$true] %s132
          %s134 = sshll.u32 %s126, 4
          %s135 = int_to_ptr.vmem [resolvable:$true] %s134
          %140 = dma.hbm_to_vmem [thread:$0]  %s133, 128, %s135, %s123, 64, 64, 4
        $region20: #{tpu_custom_call.1} parent=15 // pred_fallthru
          _
        // Predicated region
        $region21: #{tpu_custom_call.1} parent=15 // pred_check
          %p141 = pneg %p73
        $region22: #{tpu_custom_call.1} parent=15 // pred_check_branch
          %143 = sbr.rel (%p141) target = $region24
        $region23: #{tpu_custom_call.1} parent=15 // pred_region
          %s144 = sand.u32 %s63, 1
          %s145 = scalar_lea.sflag [#allocation11], %s144
          %s146 = sand.u32 %s63, 1
          %s147 = smul.addr %s146, 8
          %s148 = scalar_lea.vmem [#allocation10], %s147
          %s149 = smul.u32 2, %s23
          %151 = vsyncadd %s145, 0
          %s152 = smul.addr %s149, 4
          %s153 = scalar_lea.hbm %s1, %s152
          %s154 = sshll.u32 %s153, 4
          %s155 = int_to_ptr.hbm [resolvable:$true] %s154
          %s156 = sshll.u32 %s148, 4
          %s157 = int_to_ptr.vmem [resolvable:$true] %s156
          %162 = dma.hbm_to_vmem [thread:$0]  %s155, 128, %s157, %s145, 64, 64, 4
        $region24: #{tpu_custom_call.1} parent=15 // pred_fallthru
          _
      $region16: #{tpu_custom_call.1} parent=5 // pred_fallthru
        _
      %p163 = scmp.le.s32.totalorder 1, %s15
      %p164 = scmp.lt.s32.totalorder %s15, 5
      %p165 = pnand %p163, %p164
      %p166 = pneg %p165
      // Predicated region
      $region25: #{tpu_custom_call.1} parent=5 // pred_check
        _
      $region26: #{tpu_custom_call.1} parent=5 // pred_check_branch
        %168 = sbr.rel (%p165) target = $region28
      $region27: #{tpu_custom_call.1} parent=5 // pred_region
        %s169 = ssub.s32 %s15, 1
        %s170 = sand.u32 %s40, 1
        %s171 = scalar_lea.sflag [#allocation8], %s170
        %s172 = sand.u32 %s40, 1
        %s173 = smul.addr %s172, 8
        %s174 = scalar_lea.vmem [#allocation7], %s173
        // Predicated region
        $region29: #{tpu_custom_call.1} parent=27 // pred_check
          %p175 = pneg %p53
        $region30: #{tpu_custom_call.1} parent=27 // pred_check_branch
          %177 = sbr.rel (%p175) target = $region32
        $region31: #{tpu_custom_call.1} parent=27 // pred_region
          %179 = dma.done %s171, 128
        $region32: #{tpu_custom_call.1} parent=27 // pred_fallthru
          _
        %s180 = sand.u32 %s66, 1
        %s181 = scalar_lea.sflag [#allocation11], %s180
        %s182 = sand.u32 %s66, 1
        %s183 = smul.addr %s182, 8
        %s184 = scalar_lea.vmem [#allocation10], %s183
        // Predicated region
        $region33: #{tpu_custom_call.1} parent=27 // pred_check
          %p185 = pneg %p79
        $region34: #{tpu_custom_call.1} parent=27 // pred_check_branch
          %187 = sbr.rel (%p185) target = $region36
        $region35: #{tpu_custom_call.1} parent=27 // pred_region
          %189 = dma.done %s181, 128
        $region36: #{tpu_custom_call.1} parent=27 // pred_fallthru
          _
        %s190 = sand.u32 %s40, 1
        %s191 = scalar_lea.sflag [#allocation8], %s190
        %s192 = sand.u32 %s40, 1
        %s193 = smul.addr %s192, 8
        %s194 = scalar_lea.vmem [#allocation7], %s193
        %p195 = pneg %p53
        %p196 = pneg %p50
        %s197 = sand.u32 %s66, 1
        %s198 = scalar_lea.sflag [#allocation11], %s197
        %s199 = sand.u32 %s66, 1
        %s200 = smul.addr %s199, 8
        %s201 = scalar_lea.vmem [#allocation10], %s200
        %p202 = pneg %p79
        %p203 = pneg %p76
        %p204 = pneg %p100
        %p205 = pneg %p97
        %s206 = smul.u32 2, %s24
        %s207 = smul.u32 2, %s25
        %p209 = scmp.eq.s32.totalorder %s24, 0
        %p210 = scmp.eq.s32.totalorder %s25, 0
        %p211 = pnand %p209, %p210
        %p212 = pneg %p211
        // Predicated region
        $region37: #{tpu_custom_call.1} parent=27 // pred_check
          _
        $region38: #{tpu_custom_call.1} parent=27 // pred_check_branch
          %214 = sbr.rel (%p211) target = $region40
        $region39: #{tpu_custom_call.1} parent=27 // pred_region
          %s215 = scalar_lea.smem [#allocation6], 0
          %216 = sst [smem:[%s215]] 0.0
          %s217 = scalar_lea.smem [#allocation6], 1
          %218 = sst [smem:[%s217]] 0.0
        $region40: #{tpu_custom_call.1} parent=27 // pred_fallthru
          _
        // Predicated region
        $region41: #{tpu_custom_call.1} parent=27 // pred_check
          %p219 = pneg %p210
        $region42: #{tpu_custom_call.1} parent=27 // pred_check_branch
          %221 = sbr.rel (%p219) target = $region44
        $region43: #{tpu_custom_call.1} parent=27 // pred_region
          %vm222 = vcmask 7168
          %223 = vst.msk [vmem:[#allocation2] sm:$0xff] %vm222, -1e+30
          %224 = vst.msk [vmem:[#allocation2 + $0x8] sm:$0xff] %vm222, -1e+30
          %225 = vst.msk [vmem:[#allocation3] sm:$0xff] %vm222, 0.0
          %226 = vst.msk [vmem:[#allocation3 + $0x8] sm:$0xff] %vm222, 0.0
        $region44: #{tpu_custom_call.1} parent=27 // pred_fallthru
          _
        // Predicated region
        $region45: #{tpu_custom_call.1} parent=27 // pred_check
          %p227 = pneg %p209
        $region46: #{tpu_custom_call.1} parent=27 // pred_check_branch
          %229 = sbr.rel (%p227) target = $region48
        $region47: #{tpu_custom_call.1} parent=27 // pred_region
          %s230 = scalar_lea.vmem [#allocation4], %s25
          %vm231 = vcmask 122880
          %232 = vst.msk [vmem:[%s230] sm:$0x1] %vm231, -1e+30
          %s233 = scalar_lea.vmem [#allocation5], %s25
          %234 = vst.msk [vmem:[%s233] sm:$0x1] %vm231, 0.0
        $region48: #{tpu_custom_call.1} parent=27 // pred_fallthru
          _
        %v235 = vld [vmem:[%s174] sm:$0xf]
        %v236 = vld [vmem:[%s174 + $0x4] sm:$0xf]
        %v237 = vld [vmem:[%s184] sm:$0xf]
        %v238 = vld [vmem:[%s184 + $0x4] sm:$0xf]
        %v241 = vunpack.c.l.b16 %v235
        %v242 = vunpack.c.l.b16 %v236
        %v243 = vpack.c.b16 %v242, %v241
        %v246 = vunpack.c.l.b16 %v237
        %v247 = vunpack.c.l.b16 %v238
        %v248 = vpack.c.b16 %v247, %v246
        %vm249 = vcmask 261120
        %v251 = vsel %vm249, %v243, 0
        %v254 = vsel %vm249, %v248, 0
        %256 = vmatpush.bf16.xpose.msra.mxu0 0
        %257 = vmatpush.bf16.xpose.msra.mxu0 0
        %258 = vmatpush.bf16.xpose.msra.mxu0 0
        %259 = vmatpush.bf16.xpose.msra.mxu0 0
        %260 = vmatpush.bf16.xpose.msra.mxu0 0
        %261 = vmatpush.bf16.xpose.msra.mxu0 0
        %262 = vmatpush.bf16.xpose.msra.mxu0 0
        %263 = vmatpush.bf16.xpose.msra.mxu0 %v254
        %264 = vmatmul.bf16.gmra.mxu0 %v251
        %v265 = vpop.f32.mrf.mxu0
        %v266 = vadd.f32 0.0, %v265
        %v267 = vpop.f32.mrf.mxu0
        %v268 = vadd.f32 0.0, %v267
        %269 = vdwg.mxu0
        %s270 = smul.u32 %s25, 16
        %s271 = smul.u32 %s24, 16
        %p272 = scmp.ge.s32.totalorder %s270, %s271
        %s273 = sadd.s32 %s24, 1
        %s274 = smul.u32 %s273, 16
        %p275 = scmp.lt.s32.totalorder %s270, %s274
        %p276 = pnand %p272, %p275
        %p277 = pneg %p276
        // Predicated region
        $region49: #{tpu_custom_call.1} parent=27 // pred_check
          _
        $region50: #{tpu_custom_call.1} parent=27 // pred_check_branch
          %279 = sbr.rel (%p276) target = $region52
        $region51: #{tpu_custom_call.1} parent=27 // pred_region
          %s280 = ssub.s32 %s270, %s271
          %v281 = vlaneseq
          %v282 = vshrl.u32 %v281, 7
          %v283 = vadd.s32 %v282, 8
          %v284 = vlaneseq
          %v285 = vand.u32 %v284, 127
          %s286 = sld [smem:[#allocation6 + $0x1]]
          %v287 = vstv %s280
          %v288 = vadd.s32 %v285, %v287
          %vm289 = vcmp.eq.s32.totalorder %v282, %v288
          %vm290 = vcmp.eq.s32.totalorder %v283, %v288
          %v291 = vsel %vm289, %v266, 0.0
          %v292 = vsel %vm290, %v268, 0.0
          %vm293 = vcmask 130048
          %v294 = vsel %vm293, %v291, 0.0
          %v295 = vsel %vm293, %v292, 0.0
          %v296 = vadd.f32 %v294, %v295
          %297 = vadd.xlane.f32.xlu0 %v296
          %v298 = vpop.xlane.xlu0 %297
          %v299 = vrot.slane %v298, 4
          %v300 = vadd.f32 %v298, %v299
          %v301 = vrot.slane %v300, 2
          %v302 = vadd.f32 %v300, %v301
          %v303 = vrot.slane %v302, 1
          %v304 = vadd.f32 %v302, %v303
          %s305 = vtos %v304
          %s306 = sadd.f32 %s286, %s305
          %s307 = scalar_lea.smem [#allocation6], 1
          %308 = sst [smem:[%s307]] %s306
        $region52: #{tpu_custom_call.1} parent=27 // pred_fallthru
          _
        %vm309 = vcmask 130048
        %v310 = vsel %vm309, %v266, -inf
        %311 = vmax.xlane.f32.xlu0 %v310
        %v312 = vpop.xlane.xlu0 %311
        %v313 = vsel %vm309, %v268, -inf
        %314 = vmax.xlane.f32.xlu0 %v313
        %v315 = vpop.xlane.xlu0 %314
        %v316 = vmax.f32 %v310, %v313
        %v317 = vrot.slane %v316, 4
        %v318 = vmax.f32 %v316, %v317
        %v319 = vrot.slane %v318, 2
        %v320 = vmax.f32 %v318, %v319
        %v321 = vrot.slane %v320, 1
        %v322 = vmax.f32 %v320, %v321
        %v323 = vld [vmem:[#allocation2] sm:$0xff]
        %v324 = vld [vmem:[#allocation2 + $0x8] sm:$0xff]
        %v325 = vmax.f32 %v323, %v312
        %v326 = vmax.f32 %v324, %v315
        %s327 = scalar_lea.vmem [#allocation4], %s25
        %v328 = vld [vmem:[%s327] sm:$0x1]
        %v329 = vmax.f32 %v328, %v322
        %v330 = vsel %vm309, %v322, -inf
        %331 = vmax.xlane.f32.xlu0 %v330
        %v332 = vpop.xlane.xlu0 %331
        %s333 = vtos %v332
        %v334 = vstv %s333
        %v335 = vsub.f32 %v266, %v334
        %v336 = vsub.f32 %v268, %v334
        %v337 = vmul.f32 %v335, 1.442695
        %v338 = vpow.pop %v337
        %v339 = vmul.f32 %v336, 1.442695
        %v340 = vpow.pop %v339
        %v341 = vsel %vm309, %v338, 0.0
        %342 = vadd.xlane.f32.xlu0 %v341
        %v343 = vpop.xlane.xlu0 %342
        %v344 = vsel %vm309, %v340, 0.0
        %345 = vadd.xlane.f32.xlu0 %v344
        %v346 = vpop.xlane.xlu0 %345
        %v347 = vadd.f32 %v341, %v344
        %v348 = vrot.slane %v347, 4
        %v349 = vadd.f32 %v347, %v348
        %v350 = vrot.slane %v349, 2
        %v351 = vadd.f32 %v349, %v350
        %v352 = vrot.slane %v351, 1
        %v353 = vadd.f32 %v351, %v352
        %v354 = vld [vmem:[#allocation3] sm:$0xff]
        %v355 = vld [vmem:[#allocation3 + $0x8] sm:$0xff]
        %v356 = vsub.f32 %v323, %v325
        %v357 = vsub.f32 %v324, %v326
        %v358 = vmul.f32 %v356, 1.442695
        %v359 = vpow.pop %v358
        %v360 = vmul.f32 %v357, 1.442695
        %v361 = vpow.pop %v360
        %v362 = vmul.f32 %v354, %v359
        %v363 = vmul.f32 %v355, %v361
        %v364 = vsub.f32 %v334, %v325
        %v365 = vsub.f32 %v334, %v326
        %v366 = vmin.f32 %v364, 88.0
        %v367 = vmin.f32 %v365, 88.0
        %v368 = vmul.f32 %v366, 1.442695
        %v369 = vpow.pop %v368
        %v370 = vmul.f32 %v367, 1.442695
        %v371 = vpow.pop %v370
        %v372 = vmul.f32 %v343, %v369
        %v373 = vmul.f32 %v346, %v371
        %v374 = vadd.f32 %v362, %v372
        %v375 = vadd.f32 %v363, %v373
        %vm376 = vcmask 7168
        %377 = vst.msk [vmem:[#allocation3] sm:$0xff] %vm376, %v374
        %378 = vst.msk [vmem:[#allocation3 + $0x8] sm:$0xff] %vm376, %v375
        %s379 = scalar_lea.vmem [#allocation5], %s25
        %v380 = vld [vmem:[%s379] sm:$0x1]
        %v381 = vsub.f32 %v328, %v329
        %v382 = vmul.f32 %v381, 1.442695
        %v383 = vpow.pop %v382
        %v384 = vmul.f32 %v380, %v383
        %v385 = vsub.f32 %v334, %v329
        %v386 = vmin.f32 %v385, 88.0
        %v387 = vmul.f32 %v386, 1.442695
        %v388 = vpow.pop %v387
        %v389 = vmul.f32 %v353, %v388
        %v390 = vadd.f32 %v384, %v389
        %vm391 = vcmask 122880
        %392 = vst.msk [vmem:[%s379] sm:$0x1] %vm391, %v390
        %393 = vst.msk [vmem:[#allocation2] sm:$0xff] %vm376, %v325
        %394 = vst.msk [vmem:[#allocation2 + $0x8] sm:$0xff] %vm376, %v326
        %395 = vst.msk [vmem:[%s327] sm:$0x1] %vm391, %v329
        %p396 = scmp.eq.s32.totalorder %s25, 1
        // Predicated region
        $region53: #{tpu_custom_call.1} parent=27 // pred_check
          %p397 = pneg %p396
        $region54: #{tpu_custom_call.1} parent=27 // pred_check_branch
          %399 = sbr.rel (%p397) target = $region56
        $region55: #{tpu_custom_call.1} parent=27 // pred_region
          %s400 = sld [smem:[#allocation6]]
          %v401 = vld [vmem:[#allocation3] sm:$0xff]
          %v402 = vld [vmem:[#allocation3 + $0x8] sm:$0xff]
          %v403 = vlog2.pop %v401
          %v404 = vmul.f32 %v403, 0.6931472
          %v405 = vlog2.pop %v402
          %v406 = vmul.f32 %v405, 0.6931472
          %v407 = vld [vmem:[#allocation2] sm:$0xff]
          %v408 = vld [vmem:[#allocation2 + $0x8] sm:$0xff]
          %v409 = vadd.f32 %v404, %v407
          %v410 = vadd.f32 %v406, %v408
          %v411 = vsel %vm376, %v409, 0.0
          %v412 = vsel %vm376, %v410, 0.0
          %v413 = vadd.f32 %v411, %v412
          %414 = vadd.xlane.f32.xlu0 %v413
          %v415 = vpop.xlane.xlu0 %414
          %v416 = vrot.slane %v415, 4
          %v417 = vadd.f32 %v415, %v416
          %v418 = vrot.slane %v417, 2
          %v419 = vadd.f32 %v417, %v418
          %v420 = vrot.slane %v419, 1
          %v421 = vadd.f32 %v419, %v420
          %s422 = vtos %v421
          %s423 = sadd.f32 %s400, %s422
          %s424 = scalar_lea.smem [#allocation6], 0
          %425 = sst [smem:[%s424]] %s423
        $region56: #{tpu_custom_call.1} parent=27 // pred_fallthru
          _
        %p426 = scmp.eq.s32.totalorder %s24, 1
        %p427 = pnand %p426, %p396
        %p428 = pneg %p427
        // Predicated region
        $region57: #{tpu_custom_call.1} parent=27 // pred_check
          _
        $region58: #{tpu_custom_call.1} parent=27 // pred_check_branch
          %430 = sbr.rel (%p427) target = $region60
        $region59: #{tpu_custom_call.1} parent=27 // pred_region
          %v431 = vld [vmem:[#allocation5] sm:$0x1]
          %v432 = vld [vmem:[#allocation5 + $0x1] sm:$0x1]
          %v433 = vlog2.pop %v431
          %v434 = vmul.f32 %v433, 0.6931472
          %v435 = vlog2.pop %v432
          %v436 = vmul.f32 %v435, 0.6931472
          %v437 = vld [vmem:[#allocation4] sm:$0x1]
          %v438 = vld [vmem:[#allocation4 + $0x1] sm:$0x1]
          %v439 = vadd.f32 %v434, %v437
          %v440 = vadd.f32 %v436, %v438
          %s441 = sld [smem:[#allocation6]]
          %v442 = vsel %vm391, %v439, 0.0
          %v443 = vsel %vm391, %v440, 0.0
          %v444 = vadd.f32 %v442, %v443
          %445 = vadd.xlane.f32.xlu0 %v444
          %v446 = vpop.xlane.xlu0 %445
          %v447 = vrot.slane %v446, 4
          %v448 = vadd.f32 %v446, %v447
          %v449 = vrot.slane %v448, 2
          %v450 = vadd.f32 %v448, %v449
          %v451 = vrot.slane %v450, 1
          %v452 = vadd.f32 %v450, %v451
          %s453 = vtos %v452
          %s454 = sadd.f32 %s441, %s453
          %s455 = sld [smem:[#allocation6 + $0x1]]
          %s456 = smul.f32 %s455, 2.0
          %s457 = ssub.f32 %s454, %s456
          %s458 = smul.f32 %s457, 0.5
          %s459 = smul.f32 %s458, 0.03125
          %s460 = scalar_lea.smem [#allocation12], 0
          %461 = sst [smem:[%s460]] %s459
        $region60: #{tpu_custom_call.1} parent=27 // pred_fallthru
          _
        // Predicated region
        $region61: #{tpu_custom_call.1} parent=27 // pred_check
          %p462 = pneg %p97
        $region62: #{tpu_custom_call.1} parent=27 // pred_check_branch
          %464 = sbr.rel (%p462) target = $region64
        $region63: #{tpu_custom_call.1} parent=27 // pred_region
          %466 = vsyncadd [#allocation9], 0
          %s468 = sshll.u32 %s2, 4
          %s469 = int_to_ptr.hbm [resolvable:$true] %s468
          %471 = dma.smem_to_hbm [#allocation12], 16, %s469, [#allocation9]
        $region64: #{tpu_custom_call.1} parent=27 // pred_fallthru
          _
        // Predicated region
        $region65: #{tpu_custom_call.1} parent=27 // pred_check
          %p472 = pneg %p97
        $region66: #{tpu_custom_call.1} parent=27 // pred_check_branch
          %474 = sbr.rel (%p472) target = $region68
        $region67: #{tpu_custom_call.1} parent=27 // pred_region
          %476 = dma.done [#allocation9], 16
        $region68: #{tpu_custom_call.1} parent=27 // pred_fallthru
          _
        %477 = sfence
      $region28: #{tpu_custom_call.1} parent=5 // pred_fallthru
        _
      %p478 = scmp.le.s32.totalorder 2, %s15
      // Predicated region
      $region69: #{tpu_custom_call.1} parent=5 // pred_check
        %p479 = pneg %p478
      $region70: #{tpu_custom_call.1} parent=5 // pred_check_branch
        %481 = sbr.rel (%p479) target = $region72
      $region71: #{tpu_custom_call.1} parent=5 // pred_region
        %s482 = ssub.s32 %s15, 2
      $region72: #{tpu_custom_call.1} parent=5 // pred_fallthru
        _
    $region6: #{tpu_custom_call.1} parent=1 // loop_footer
      %s19 = sadd.s32 1, %s15
    $region7: #{tpu_custom_call.1} parent=1 // loop_footer_branch
      %14 = sbr.rel target = $region3
    $region8: #{tpu_custom_call.1} parent=1 // loop_exit
      _
    %483 = vsyncpa [#allocation8], 1
    %s484 = scalar_lea.sflag [#allocation8], 1
    %485 = vsyncpa %s484, 1
    %486 = vsyncpa [#allocation11], 1
    %s487 = scalar_lea.sflag [#allocation11], 1
    %488 = vsyncpa %s487, 1
    %489 = vsyncpa [#allocation9], 1
    %s490 = scalar_lea.sflag [#allocation9], 1
    %491 = vsyncpa %s490, 1

</llo_original>
